<compile_context>
chip_gen: v6e
topology: v6e:2x2x1
jax: 0.10.0
libtpu: 0.0.40
codegen_flags: <defaults>
</compile_context>

<pallas_src>
import functools

import jax
import jax.numpy as jnp
from jax import lax
from jax.experimental import pallas as pl
from jax.experimental.pallas import tpu as pltpu

EMBEDDING_DIM = 7
NUM_FEATURES = 10      # cpi, gdp, unemployment_rate, job_approval, ...
HIDDEN1 = 64
HIDDEN2 = 32
OUT_DIM = 1

_MAX_TILE_B = 4096     # lanes (batch rows) per grid step


def _fused_mlp_kernel(idx_ref, num_ref, sproj_ref, w1n_ref,
                      w2_ref, b2_ref, w3_ref, b3_ref, o_ref):
    """One batch tile, batch on the lane axis:
       idx_ref   (1,  TB) int32   state index per column
       num_ref   (F,  TB)         numeric features (transposed)
       sproj_ref (H1, S)          (emb @ W1[:E] + b1).T  -- per-state fc1 term, bias folded
       w1n_ref   (H1, F), w2 (H2, H1), b2 (H2, 1), w3 (1, H2), b3 (1, 1)
       o_ref     (1,  TB) f32
    """
    idx = idx_ref[...]                                              # (1, TB) i32
    n_states = sproj_ref.shape[1]
    tb = idx.shape[1]
    states = lax.broadcasted_iota(jnp.int32, (n_states, tb), 0)
    onehot = (states == idx).astype(sproj_ref.dtype)                # (S, TB)

    # fc1: gathered per-state contribution (bias folded) + numeric contribution.
    h1 = jnp.dot(sproj_ref[...], onehot, preferred_element_type=jnp.float32)
    h1 = h1 + jnp.dot(w1n_ref[...], num_ref[...],
                      preferred_element_type=jnp.float32)
    h1 = jnp.maximum(h1, 0.0)                                       # (H1, TB) f32

    # fc2
    h2 = jnp.dot(w2_ref[...], h1.astype(w2_ref.dtype),
                 preferred_element_type=jnp.float32)
    h2 = jnp.maximum(h2 + b2_ref[...], 0.0)                         # (H2, TB) f32

    # fc3: (1, H2) @ (H2, TB) -> lane-dense (1, TB) row.
    out = jnp.dot(w3_ref[...], h2.astype(w3_ref.dtype),
                  preferred_element_type=jnp.float32)
    o_ref[...] = (out + b3_ref[...]).astype(o_ref.dtype)


def _pick_tile(batch):
    """Lane tile size: single tile for small batches; for large batches produce
    >=2 tiles that are multiples of 128 (lane-dense, v7x 2-TC sharding)."""
    if batch <= 1024:
        return batch
    half = -(-batch // 2)                      # cdiv(B, 2)
    half = ((half + 127) // 128) * 128         # round up to lane multiple
    return min(_MAX_TILE_B, half)


def _election_mlp_pallas(idx_t, num_t, state_proj_t, w1n_t, w2_t, b2_t, w3, b3):
    """idx_t (1,B) int32, num_t (F,B) -> (1,B) f32."""
    _, batch = num_t.shape
    tb = _pick_tile(batch)
    grid = (pl.cdiv(batch, tb),)

    def col_spec(rows):
        return pl.BlockSpec((rows, tb), lambda i: (0, i))

    def resident(a):   # weights: same block every grid step -> stays in VMEM
        return pl.BlockSpec(a.shape, lambda i: (0, 0))

    return pl.pallas_call(
        _fused_mlp_kernel,
        out_shape=jax.ShapeDtypeStruct((1, batch), jnp.float32),
        grid=grid,
        in_specs=[col_spec(1), col_spec(num_t.shape[0]),
                  resident(state_proj_t), resident(w1n_t),
                  resident(w2_t), resident(b2_t), resident(w3), resident(b3)],
        out_specs=col_spec(OUT_DIM),
        compiler_params=pltpu.CompilerParams(
            dimension_semantics=("parallel",)),
    )(idx_t, num_t, state_proj_t, w1n_t, w2_t, b2_t, w3, b3)


def init_params(num_states, embedding_dim, num_features, key):
    """Deterministic init mirroring PyTorch default shapes (not a checkpoint)."""
    k_emb, k1, k1b, k2, k2b, k3, k3b = jax.random.split(key, 7)
    in1 = embedding_dim + num_features
    u = lambda k, shape, fan_in: jax.random.uniform(
        k, shape, jnp.float32, -1.0 / jnp.sqrt(fan_in), 1.0 / jnp.sqrt(fan_in))
    return {
        "embedding": jax.random.normal(k_emb, (num_states, embedding_dim),
                                       jnp.float32),
        "w1": u(k1, (in1, HIDDEN1), in1),        # [in, out] (PyTorch weight.T)
        "b1": u(k1b, (1, HIDDEN1), in1),
        "w2": u(k2, (HIDDEN1, HIDDEN2), HIDDEN1),
        "b2": u(k2b, (1, HIDDEN2), HIDDEN1),
        "w3": u(k3, (1, HIDDEN2), HIDDEN2),      # PyTorch fc3.weight layout (1, 32)
        "b3": u(k3b, (1, OUT_DIM), HIDDEN2),
    }


@functools.partial(jax.jit, static_argnames=("use_bf16",))
def election_model_forward(params, state_idx, numeric_features, use_bf16=False):
    """Parameter-only prep in JAX; whole per-row pipeline fused in one Pallas kernel."""
    emb = params["embedding"]                  # (S, E)
    w1 = params["w1"]                          # (E + padded_F, H1)
    e_dim = emb.shape[1]
    f_dim = numeric_features.shape[1]

    # Fold embedding table AND b1 into fc1's per-state term (exact: each
    # one-hot column sums to 1), transposed for batch-on-lanes compute.
    state_proj_t = (emb @ w1[:e_dim] + params["b1"]).T        # (H1, S)
    # PyTorch zero-pads numeric_features up to fc1.in_features - E; padded
    # columns contribute 0, so using only the matching W1 rows is identical.
    w1n_t = w1[e_dim:e_dim + f_dim].T                          # (H1, F)
    w2_t = params["w2"].T                                      # (H2, H1)
    b2_t = params["b2"].T                                      # (H2, 1)
    w3 = params["w3"]                                          # (1, H2)
    b3 = params["b3"]                                          # (1, 1)

    idx_t = state_idx.astype(jnp.int32).reshape(1, -1)         # (1, B)
    num_t = numeric_features.astype(jnp.float32).T             # (F, B)

    if use_bf16:
        # bf16 HBM I/O + MXU inputs, f32 accumulation (v6e/v7x friendly).
        num_t = num_t.astype(jnp.bfloat16)
        state_proj_t = state_proj_t.astype(jnp.bfloat16)
        w1n_t = w1n_t.astype(jnp.bfloat16)
        w2_t = w2_t.astype(jnp.bfloat16)
        w3 = w3.astype(jnp.bfloat16)

    out_row = _election_mlp_pallas(idx_t, num_t, state_proj_t, w1n_t,
                                   w2_t, b2_t, w3, b3)          # (1, B) f32
    return out_row.reshape(-1, OUT_DIM)                         # (B, 1)


def _reference_forward(params, state_idx, numeric_features):
    """Pure-JAX reference mirroring the PyTorch module exactly."""
    emb = jnp.take(params["embedding"], state_idx, axis=0)
    x = jnp.concatenate([emb, numeric_features], axis=1)
    h1 = jnp.maximum(x @ params["w1"] + params["b1"], 0.0)
    h2 = jnp.maximum(h1 @ params["w2"] + params["b2"], 0.0)
    return h2 @ params["w3"].T + params["b3"]


if __name__ == "__main__":
    key = jax.random.PRNGKey(0)
    k_params, k_idx, k_feat, k_idx2, k_feat2 = jax.random.split(key, 5)

    num_states = 16
    params = init_params(num_states, EMBEDDING_DIM, NUM_FEATURES, k_params)

    # Small-shape run (single lane-dense tile path).
    batch = 16
    state_idx = jax.random.randint(k_idx, (batch,), 0, num_states, dtype=jnp.int32)
    numeric = jax.random.normal(k_feat, (batch, NUM_FEATURES), jnp.float32)
    out = jax.block_until_ready(election_model_forward(params, state_idx, numeric))
    ref = _reference_forward(params, state_idx, numeric)
    assert out.shape == (batch, OUT_DIM), out.shape
    assert jnp.allclose(out, ref, atol=1e-4, rtol=1e-4), "mismatch vs reference (small)"

    # Larger run exercising the tiled grid path including a partial last tile
    # (B=1300 -> TB=768, grid=(2,), last tile has 532 valid lanes).
    batch2 = 1300
    state_idx2 = jax.random.randint(k_idx2, (batch2,), 0, num_states, dtype=jnp.int32)
    numeric2 = jax.random.normal(k_feat2, (batch2, NUM_FEATURES), jnp.float32)
    out2 = jax.block_until_ready(election_model_forward(params, state_idx2, numeric2))
    ref2 = _reference_forward(params, state_idx2, numeric2)
    assert out2.shape == (batch2, OUT_DIM), out2.shape
    assert jnp.allclose(out2, ref2, atol=1e-4, rtol=1e-4), "mismatch vs reference (tiled)"

    print("KERNEL_OK")
</pallas_src>

<mosaic_0001>
module attributes {stable_mosaic.version = 11 : i64} {
  func.func @_fused_mlp_kernel(%arg0: i32, %arg1: memref<1x16xi32, #tpu.memory_space<vmem>>, %arg2: memref<10x16xf32, #tpu.memory_space<vmem>>, %arg3: memref<64x16xf32, #tpu.memory_space<vmem>>, %arg4: memref<64x10xf32, #tpu.memory_space<vmem>>, %arg5: memref<32x64xf32, #tpu.memory_space<vmem>>, %arg6: memref<32x1xf32, #tpu.memory_space<vmem>>, %arg7: memref<1x32xf32, #tpu.memory_space<vmem>>, %arg8: memref<1x1xf32, #tpu.memory_space<vmem>>, %arg9: memref<1x16xf32, #tpu.memory_space<vmem>>) attributes {dimension_semantics = [#tpu.dimension_semantics<parallel>], iteration_bounds = array<i64: 1>, scalar_prefetch = 0 : i64, scratch_operands = 0 : i64, tpu.core_type = #tpu.core_type<tc>, window_params = [{transform_indices = @transform_0, window_bounds = array<i64: 1, 16>}, {transform_indices = @transform_1, window_bounds = array<i64: 10, 16>}, {pipeline_mode = #tpu.pipeline_mode<synchronous>, transform_indices = @transform_2, window_bounds = array<i64: 64, 16>}, {pipeline_mode = #tpu.pipeline_mode<synchronous>, transform_indices = @transform_3, window_bounds = array<i64: 64, 10>}, {pipeline_mode = #tpu.pipeline_mode<synchronous>, transform_indices = @transform_4, window_bounds = array<i64: 32, 64>}, {pipeline_mode = #tpu.pipeline_mode<synchronous>, transform_indices = @transform_5, window_bounds = array<i64: 32, 1>}, {pipeline_mode = #tpu.pipeline_mode<synchronous>, transform_indices = @transform_6, window_bounds = array<i64: 1, 32>}, {pipeline_mode = #tpu.pipeline_mode<synchronous>, transform_indices = @transform_7, window_bounds = array<i64: 1, 1>}, {transform_indices = @transform_8, window_bounds = array<i64: 1, 16>}]} {
    %c0 = arith.constant 0 : index
    %c0_0 = arith.constant 0 : index
    %0 = vector.load %arg1[%c0, %c0_0] : memref<1x16xi32, #tpu.memory_space<vmem>>, vector<1x16xi32>
    %1 = tpu.iota {dimensions = array<i32: 0>} : vector<16x16xi32>
    %2 = vector.broadcast %0 : vector<1x16xi32> to vector<16x16xi32>
    %3 = arith.cmpi eq, %1, %2 : vector<16x16xi32>
    %4 = arith.extui %3 : vector<16x16xi1> to vector<16x16xi32>
    %5 = arith.sitofp %4 : vector<16x16xi32> to vector<16x16xf32>
    %c0_1 = arith.constant 0 : index
    %c0_2 = arith.constant 0 : index
    %6 = vector.load %arg3[%c0_1, %c0_2] : memref<64x16xf32, #tpu.memory_space<vmem>>, vector<64x16xf32>
    %cst = arith.constant dense<0.000000e+00> : vector<64x16xf32>
    %7 = tpu.matmul %6, %5, %cst {dimension_numbers = #tpu.dot_dimension_numbers<[1], [0], [0], [1], [0, 0, 1, 1], [], []>} : vector<64x16xf32>, vector<16x16xf32>, vector<64x16xf32> -> vector<64x16xf32>
    %c0_3 = arith.constant 0 : index
    %c0_4 = arith.constant 0 : index
    %8 = vector.load %arg4[%c0_3, %c0_4] : memref<64x10xf32, #tpu.memory_space<vmem>>, vector<64x10xf32>
    %c0_5 = arith.constant 0 : index
    %c0_6 = arith.constant 0 : index
    %9 = vector.load %arg2[%c0_5, %c0_6] : memref<10x16xf32, #tpu.memory_space<vmem>>, vector<10x16xf32>
    %cst_7 = arith.constant dense<0.000000e+00> : vector<64x16xf32>
    %10 = tpu.matmul %8, %9, %cst_7 {dimension_numbers = #tpu.dot_dimension_numbers<[1], [0], [0], [1], [0, 0, 1, 1], [], []>} : vector<64x10xf32>, vector<10x16xf32>, vector<64x16xf32> -> vector<64x16xf32>
    %11 = arith.addf %7, %10 : vector<64x16xf32>
    %cst_8 = arith.constant 0.000000e+00 : f32
    %12 = vector.broadcast %cst_8 : f32 to vector<64x16xf32>
    %13 = arith.maximumf %11, %12 : vector<64x16xf32>
    %c0_9 = arith.constant 0 : index
    %c0_10 = arith.constant 0 : index
    %14 = vector.load %arg5[%c0_9, %c0_10] : memref<32x64xf32, #tpu.memory_space<vmem>>, vector<32x64xf32>
    %cst_11 = arith.constant dense<0.000000e+00> : vector<32x16xf32>
    %15 = tpu.matmul %14, %13, %cst_11 {dimension_numbers = #tpu.dot_dimension_numbers<[1], [0], [0], [1], [0, 0, 1, 1], [], []>} : vector<32x64xf32>, vector<64x16xf32>, vector<32x16xf32> -> vector<32x16xf32>
    %c0_12 = arith.constant 0 : index
    %c0_13 = arith.constant 0 : index
    %16 = vector.load %arg6[%c0_12, %c0_13] : memref<32x1xf32, #tpu.memory_space<vmem>>, vector<32x1xf32>
    %17 = vector.broadcast %16 : vector<32x1xf32> to vector<32x16xf32>
    %18 = arith.addf %15, %17 : vector<32x16xf32>
    %cst_14 = arith.constant 0.000000e+00 : f32
    %19 = vector.broadcast %cst_14 : f32 to vector<32x16xf32>
    %20 = arith.maximumf %18, %19 : vector<32x16xf32>
    %c0_15 = arith.constant 0 : index
    %c0_16 = arith.constant 0 : index
    %21 = vector.load %arg7[%c0_15, %c0_16] : memref<1x32xf32, #tpu.memory_space<vmem>>, vector<1x32xf32>
    %cst_17 = arith.constant dense<0.000000e+00> : vector<1x16xf32>
    %22 = tpu.matmul %21, %20, %cst_17 {dimension_numbers = #tpu.dot_dimension_numbers<[1], [0], [0], [1], [0, 0, 1, 1], [], []>} : vector<1x32xf32>, vector<32x16xf32>, vector<1x16xf32> -> vector<1x16xf32>
    %c0_18 = arith.constant 0 : index
    %c0_19 = arith.constant 0 : index
    %23 = vector.load %arg8[%c0_18, %c0_19] : memref<1x1xf32, #tpu.memory_space<vmem>>, vector<1x1xf32>
    %24 = vector.broadcast %23 : vector<1x1xf32> to vector<1x16xf32>
    %25 = arith.addf %22, %24 : vector<1x16xf32>
    %c0_20 = arith.constant 0 : index
    %c0_21 = arith.constant 0 : index
    %26 = vector.load %arg9[%c0_20, %c0_21] : memref<1x16xf32, #tpu.memory_space<vmem>>, vector<1x16xf32>
    tpu.vector_store %arg9[%c0_20, %c0_21], %25 {strides = array<i32>} : memref<1x16xf32, #tpu.memory_space<vmem>>, vector<1x16xf32>,
    return
  }
  func.func @transform_0(%arg0: i32) -> (i32, i32) {
    %c0_i32 = arith.constant 0 : i32
    %c0_i32_0 = arith.constant 0 : i32
    return %c0_i32, %arg0 : i32, i32
  }
  func.func @transform_1(%arg0: i32) -> (i32, i32) {
    %c0_i32 = arith.constant 0 : i32
    %c0_i32_0 = arith.constant 0 : i32
    return %c0_i32, %arg0 : i32, i32
  }
  func.func @transform_2(%arg0: i32) -> (i32, i32) {
    %c0_i32 = arith.constant 0 : i32
    %c0_i32_0 = arith.constant 0 : i32
    %c0_i32_1 = arith.constant 0 : i32
    return %c0_i32, %c0_i32_0 : i32, i32
  }
  func.func @transform_3(%arg0: i32) -> (i32, i32) {
    %c0_i32 = arith.constant 0 : i32
    %c0_i32_0 = arith.constant 0 : i32
    %c0_i32_1 = arith.constant 0 : i32
    return %c0_i32, %c0_i32_0 : i32, i32
  }
  func.func @transform_4(%arg0: i32) -> (i32, i32) {
    %c0_i32 = arith.constant 0 : i32
    %c0_i32_0 = arith.constant 0 : i32
    %c0_i32_1 = arith.constant 0 : i32
    return %c0_i32, %c0_i32_0 : i32, i32
  }
  func.func @transform_5(%arg0: i32) -> (i32, i32) {
    %c0_i32 = arith.constant 0 : i32
    %c0_i32_0 = arith.constant 0 : i32
    %c0_i32_1 = arith.constant 0 : i32
    return %c0_i32, %c0_i32_0 : i32, i32
  }
  func.func @transform_6(%arg0: i32) -> (i32, i32) {
    %c0_i32 = arith.constant 0 : i32
    %c0_i32_0 = arith.constant 0 : i32
    %c0_i32_1 = arith.constant 0 : i32
    return %c0_i32, %c0_i32_0 : i32, i32
  }
  func.func @transform_7(%arg0: i32) -> (i32, i32) {
    %c0_i32 = arith.constant 0 : i32
    %c0_i32_0 = arith.constant 0 : i32
    %c0_i32_1 = arith.constant 0 : i32
    return %c0_i32, %c0_i32_0 : i32, i32
  }
  func.func @transform_8(%arg0: i32) -> (i32, i32) {
    %c0_i32 = arith.constant 0 : i32
    %c0_i32_0 = arith.constant 0 : i32
    return %c0_i32, %arg0 : i32, i32
  }
}

</mosaic_0001>

<llo_original>
// kernel: election_model_forward.1
$region0: #{election_model_forward.1}
  #allocation0 [shape = 'u32[]', space=smem, size = 0x4, offset = 0x4, fixed_abs, tag = 'smem constant byte address 0x4 - core index']
  #allocation1 [shape = 'u32[144,128]{1,0:T(1,128)}', space=vmem, size = 0x12000, scoped, tag = 'internal scratch']
  #allocation2 [shape = 'f32[1,1]{1,0:T(1,128)S(1)}', space=vmem, size = 0x200, scoped, tag = 'scoped memory for election_model_forward.1']
  %s0 = inlined_call_operand.vmem [shape: s32[1,16], index: 0, kind: input, shape index: {}]
  %s1 = inlined_call_operand.vmem [shape: f32[10,16], index: 1, kind: input, shape index: {}]
  %s2 = inlined_call_operand.vmem [shape: f32[64,16], index: 2, kind: input, shape index: {}]
  %s3 = inlined_call_operand.vmem [shape: f32[64,10], index: 3, kind: input, shape index: {}]
  %s4 = inlined_call_operand.vmem [shape: f32[32,64], index: 4, kind: input, shape index: {}]
  %s5 = inlined_call_operand.vmem [shape: f32[32,1], index: 5, kind: input, shape index: {}]
  %s6 = inlined_call_operand.vmem [shape: f32[1,32], index: 6, kind: input, shape index: {}]
  %s7 = inlined_call_operand.<no memory space> [shape: f32[1,1], index: 7, kind: input, shape index: {}]
  %s8 = inlined_call_operand.hbm [shape: f32[1,16], index: 8, kind: output, shape index: {}]
  %s9 = sld [smem:[#allocation0]]
  $region42: #{election_model_forward.1} parent=0
    _
  %s11 = ssub.s32 1, %s9
  %s12 = scalar_select 0, %s11, %s9
  %v13 = vstv %s7
  %14 = vst [vmem:[#allocation2] sm:$0x1] %v13
  $region1: #{election_model_forward.1} parent=0
    #allocation3 [shape = 'u8[512]{0}', space=vmem, size = 0x400, scoped, tag = 'output window, operand 0, single buffered']
    #allocation4 [shape = 's32[1]{0}', space=sflag, size = 0x4, scoped, tag = 'scoped memory for election_model_forward.1']
    %15 = vsyncpa [#allocation4], 0
    // Predicated region
    $region2: #{election_model_forward.1} parent=1 // pred_check
      _
    $region3: #{election_model_forward.1} parent=1 // pred_check_branch
      %17 = sbr.rel (0) target = $region5
    $region4: #{election_model_forward.1} parent=1 // pred_region
      _
    $region5: #{election_model_forward.1} parent=1 // pred_fallthru
      _
    // Predicated region
    $region6: #{election_model_forward.1} parent=1 // pred_check
      _
    $region7: #{election_model_forward.1} parent=1 // pred_check_branch
      %19 = sbr.rel (0) target = $region9
    $region8: #{election_model_forward.1} parent=1 // pred_region
      _
    $region9: #{election_model_forward.1} parent=1 // pred_fallthru
      _
    // Predicated region
    $region10: #{election_model_forward.1} parent=1 // pred_check
      _
    $region11: #{election_model_forward.1} parent=1 // pred_check_branch
      %21 = sbr.rel (0) target = $region13
    $region12: #{election_model_forward.1} parent=1 // pred_region
      _
    $region13: #{election_model_forward.1} parent=1 // pred_fallthru
      _
    // Predicated region
    $region14: #{election_model_forward.1} parent=1 // pred_check
      _
    $region15: #{election_model_forward.1} parent=1 // pred_check_branch
      %23 = sbr.rel (0) target = $region17
    $region16: #{election_model_forward.1} parent=1 // pred_region
      _
    $region17: #{election_model_forward.1} parent=1 // pred_fallthru
      _
    // Predicated region
    $region18: #{election_model_forward.1} parent=1 // pred_check
      _
    $region19: #{election_model_forward.1} parent=1 // pred_check_branch
      %25 = sbr.rel (0) target = $region21
    $region20: #{election_model_forward.1} parent=1 // pred_region
      _
    $region21: #{election_model_forward.1} parent=1 // pred_fallthru
      _
    // Predicated region
    $region22: #{election_model_forward.1} parent=1 // pred_check
      _
    $region23: #{election_model_forward.1} parent=1 // pred_check_branch
      %27 = sbr.rel (0) target = $region25
    $region24: #{election_model_forward.1} parent=1 // pred_region
      _
    $region25: #{election_model_forward.1} parent=1 // pred_fallthru
      _
    // Predicated region
    $region26: #{election_model_forward.1} parent=1 // pred_check
      _
    $region27: #{election_model_forward.1} parent=1 // pred_check_branch
      %29 = sbr.rel (0) target = $region29
    $region28: #{election_model_forward.1} parent=1 // pred_region
      _
    $region29: #{election_model_forward.1} parent=1 // pred_fallthru
      _
    // Predicated region
    $region30: #{election_model_forward.1} parent=1 // pred_check
      _
    $region31: #{election_model_forward.1} parent=1 // pred_check_branch
      %31 = sbr.rel (0) target = $region33
    $region32: #{election_model_forward.1} parent=1 // pred_region
      _
    $region33: #{election_model_forward.1} parent=1 // pred_fallthru
      _
    %v32 = vld [vmem:[%s0] sm:$0x1]
    %v33 = vlaneseq
    %v34 = vshrl.u32 %v33, 7
    %v35 = vadd.s32 %v34, 8
    %v36 = vlaneseq
    %v37 = vshrl.u32 %v36, 7
    %v38 = vsub.s32 0, %v37
    %v39 = vrot.slane %v32, %v38
    %vm40 = vcmp.eq.s32.totalorder %v34, %v39
    %vm41 = vcmp.eq.s32.totalorder %v35, %v39
    %v42 = vsel %vm40, 1, 0
    %v43 = vsel %vm41, 1, 0
    %v44 = vcvt.s32.f32 %v42
    %v45 = vcvt.s32.f32 %v43
    %v46 = vld [vmem:[%s2] sm:$0xff]
    %v47 = vld [vmem:[%s2 + $0x8] sm:$0xff]
    %v48 = vld [vmem:[%s2 + $0x10] sm:$0xff]
    %v49 = vld [vmem:[%s2 + $0x18] sm:$0xff]
    %v50 = vld [vmem:[%s2 + $0x20] sm:$0xff]
    %v51 = vld [vmem:[%s2 + $0x28] sm:$0xff]
    %v52 = vld [vmem:[%s2 + $0x30] sm:$0xff]
    %v53 = vld [vmem:[%s2 + $0x38] sm:$0xff]
    %v54 = vld [vmem:[%s3] sm:$0xff]
    %v55 = vld [vmem:[%s3 + $0x8] sm:$0xff]
    %v56 = vld [vmem:[%s3 + $0x10] sm:$0xff]
    %v57 = vld [vmem:[%s3 + $0x18] sm:$0xff]
    %v58 = vld [vmem:[%s3 + $0x20] sm:$0xff]
    %v59 = vld [vmem:[%s3 + $0x28] sm:$0xff]
    %v60 = vld [vmem:[%s3 + $0x30] sm:$0xff]
    %v61 = vld [vmem:[%s3 + $0x38] sm:$0xff]
    %v62 = vld [vmem:[%s1] sm:$0xff]
    %v63 = vld [vmem:[%s1 + $0x8] sm:$0x3]
    %vm64 = vcmask 80896
    %v66 = vsel %vm64, %v54, 0
    %v69 = vsel %vm64, %v55, 0
    %v72 = vsel %vm64, %v56, 0
    %v75 = vsel %vm64, %v57, 0
    %v78 = vsel %vm64, %v58, 0
    %v81 = vsel %vm64, %v59, 0
    %v84 = vsel %vm64, %v60, 0
    %v87 = vsel %vm64, %v61, 0
    %vm89 = vcmask 1041408
    %v91 = vsel %vm89, %v63, 0
    %93 = vmatprep.subr.mxu0 0.0
    %94 = vmatpush1.msra.mxu0 0.0
    %95 = vmatprep.subr.mxu0 0.0
    %96 = vmatpush1.msra.mxu0 0.0
    %97 = vmatprep.subr.mxu0 0.0
    %98 = vmatpush1.msra.mxu0 0.0
    %99 = vmatprep.subr.mxu0 0.0
    %100 = vmatpush1.msra.mxu0 0.0
    %101 = vmatprep.subr.mxu0 0.0
    %102 = vmatpush1.msra.mxu0 0.0
    %103 = vmatprep.subr.mxu0 0.0
    %104 = vmatpush1.msra.mxu0 0.0
    %105 = vmatprep.subr.mxu0 0.0
    %106 = vmatpush1.msra.mxu0 0.0
    %107 = vmatprep.subr.mxu0 0.0
    %108 = vmatpush1.msra.mxu0 0.0
    %109 = vmatprep.subr.mxu0 0.0
    %110 = vmatpush1.msra.mxu0 0.0
    %111 = vmatprep.subr.mxu0 0.0
    %112 = vmatpush1.msra.mxu0 0.0
    %113 = vmatprep.subr.mxu0 0.0
    %114 = vmatpush1.msra.mxu0 0.0
    %115 = vmatprep.subr.mxu0 0.0
    %116 = vmatpush1.msra.mxu0 0.0
    %117 = vmatprep.subr.mxu0 0.0
    %118 = vmatpush1.msra.mxu0 0.0
    %119 = vmatprep.subr.mxu0 0.0
    %120 = vmatpush1.msra.mxu0 0.0
    %121 = vmatprep.subr.mxu0 0.0
    %122 = vmatpush1.msra.mxu0 %v91
    %123 = vmatprep.subr.mxu0 0.0
    %124 = vmatpush1.msra.mxu0 %v62
    %125 = vmatprep.subr.mxu0 0.0
    %126 = vmatpush2.msra.mxu0 0.0
    %127 = vmatprep.subr.mxu0 0.0
    %128 = vmatpush2.msra.mxu0 0.0
    %129 = vmatprep.subr.mxu0 0.0
    %130 = vmatpush2.msra.mxu0 0.0
    %131 = vmatprep.subr.mxu0 0.0
    %132 = vmatpush2.msra.mxu0 0.0
    %133 = vmatprep.subr.mxu0 0.0
    %134 = vmatpush2.msra.mxu0 0.0
    %135 = vmatprep.subr.mxu0 0.0
    %136 = vmatpush2.msra.mxu0 0.0
    %137 = vmatprep.subr.mxu0 0.0
    %138 = vmatpush2.msra.mxu0 0.0
    %139 = vmatprep.subr.mxu0 0.0
    %140 = vmatpush2.msra.mxu0 0.0
    %141 = vmatprep.subr.mxu0 0.0
    %142 = vmatpush2.msra.mxu0 0.0
    %143 = vmatprep.subr.mxu0 0.0
    %144 = vmatpush2.msra.mxu0 0.0
    %145 = vmatprep.subr.mxu0 0.0
    %146 = vmatpush2.msra.mxu0 0.0
    %147 = vmatprep.subr.mxu0 0.0
    %148 = vmatpush2.msra.mxu0 0.0
    %149 = vmatprep.subr.mxu0 0.0
    %150 = vmatpush2.msra.mxu0 0.0
    %151 = vmatprep.subr.mxu0 0.0
    %152 = vmatpush2.msra.mxu0 0.0
    %153 = vmatprep.subr.mxu0 0.0
    %154 = vmatpush2.msra.mxu0 0.0
    %155 = vmatprep.subr.mxu0 0.0
    %156 = vmatpush2.msra.mxu0 0.0
    %157 = vmatprep.mubr.f32.mxu0 0.0
    %158 = vmatmul.mubr.f32.gmra.mxu0 %v66
    %v159 = vpop.f32.mrf.mxu0
    %v160 = vadd.f32 0.0, %v159
    %v161 = vpop.f32.mrf.mxu0
    %162 = vmatprep.mubr.f32.mxu0 0.0
    %163 = vmatmul.mubr.f32.gmra.mxu0 %v69
    %v164 = vpop.f32.mrf.mxu0
    %v165 = vadd.f32 0.0, %v164
    %v166 = vpop.f32.mrf.mxu0
    %167 = vmatprep.mubr.f32.mxu0 0.0
    %168 = vmatmul.mubr.f32.gmra.mxu0 %v72
    %v169 = vpop.f32.mrf.mxu0
    %v170 = vadd.f32 0.0, %v169
    %v171 = vpop.f32.mrf.mxu0
    %172 = vmatprep.mubr.f32.mxu0 0.0
    %173 = vmatmul.mubr.f32.gmra.mxu0 %v75
    %v174 = vpop.f32.mrf.mxu0
    %v175 = vadd.f32 0.0, %v174
    %v176 = vpop.f32.mrf.mxu0
    %177 = vmatprep.mubr.f32.mxu0 0.0
    %178 = vmatmul.mubr.f32.gmra.mxu0 %v78
    %v179 = vpop.f32.mrf.mxu0
    %v180 = vadd.f32 0.0, %v179
    %v181 = vpop.f32.mrf.mxu0
    %182 = vmatprep.mubr.f32.mxu0 0.0
    %183 = vmatmul.mubr.f32.gmra.mxu0 %v81
    %v184 = vpop.f32.mrf.mxu0
    %v185 = vadd.f32 0.0, %v184
    %v186 = vpop.f32.mrf.mxu0
    %187 = vmatprep.mubr.f32.mxu0 0.0
    %188 = vmatmul.mubr.f32.gmra.mxu0 %v84
    %v189 = vpop.f32.mrf.mxu0
    %v190 = vadd.f32 0.0, %v189
    %v191 = vpop.f32.mrf.mxu0
    %192 = vmatprep.mubr.f32.mxu0 0.0
    %193 = vmatmul.mubr.f32.gmra.mxu0 %v87
    %v194 = vpop.f32.mrf.mxu0
    %v195 = vadd.f32 0.0, %v194
    %v196 = vpop.f32.mrf.mxu0
    %197 = vdwg.mxu0
    %vm198 = vcmask 130048
    %v200 = vsel %vm198, %v46, 0
    %v203 = vsel %vm198, %v47, 0
    %v206 = vsel %vm198, %v48, 0
    %v209 = vsel %vm198, %v49, 0
    %v212 = vsel %vm198, %v50, 0
    %v215 = vsel %vm198, %v51, 0
    %v218 = vsel %vm198, %v52, 0
    %v221 = vsel %vm198, %v53, 0
    %223 = vmatprep.subr.mxu0 0.0
    %224 = vmatpush1.msra.mxu0 0.0
    %225 = vmatprep.subr.mxu0 0.0
    %226 = vmatpush1.msra.mxu0 0.0
    %227 = vmatprep.subr.mxu0 0.0
    %228 = vmatpush1.msra.mxu0 0.0
    %229 = vmatprep.subr.mxu0 0.0
    %230 = vmatpush1.msra.mxu0 0.0
    %231 = vmatprep.subr.mxu0 0.0
    %232 = vmatpush1.msra.mxu0 0.0
    %233 = vmatprep.subr.mxu0 0.0
    %234 = vmatpush1.msra.mxu0 0.0
    %235 = vmatprep.subr.mxu0 0.0
    %236 = vmatpush1.msra.mxu0 0.0
    %237 = vmatprep.subr.mxu0 0.0
    %238 = vmatpush1.msra.mxu0 0.0
    %239 = vmatprep.subr.mxu0 0.0
    %240 = vmatpush1.msra.mxu0 0.0
    %241 = vmatprep.subr.mxu0 0.0
    %242 = vmatpush1.msra.mxu0 0.0
    %243 = vmatprep.subr.mxu0 0.0
    %244 = vmatpush1.msra.mxu0 0.0
    %245 = vmatprep.subr.mxu0 0.0
    %246 = vmatpush1.msra.mxu0 0.0
    %247 = vmatprep.subr.mxu0 0.0
    %248 = vmatpush1.msra.mxu0 0.0
    %249 = vmatprep.subr.mxu0 0.0
    %250 = vmatpush1.msra.mxu0 0.0
    %251 = vmatprep.subr.mxu0 0.0
    %252 = vmatpush1.msra.mxu0 %v45
    %253 = vmatprep.subr.mxu0 0.0
    %254 = vmatpush1.msra.mxu0 %v44
    %255 = vmatprep.subr.mxu0 0.0
    %256 = vmatpush2.msra.mxu0 0.0
    %257 = vmatprep.subr.mxu0 0.0
    %258 = vmatpush2.msra.mxu0 0.0
    %259 = vmatprep.subr.mxu0 0.0
    %260 = vmatpush2.msra.mxu0 0.0
    %261 = vmatprep.subr.mxu0 0.0
    %262 = vmatpush2.msra.mxu0 0.0
    %263 = vmatprep.subr.mxu0 0.0
    %264 = vmatpush2.msra.mxu0 0.0
    %265 = vmatprep.subr.mxu0 0.0
    %266 = vmatpush2.msra.mxu0 0.0
    %267 = vmatprep.subr.mxu0 0.0
    %268 = vmatpush2.msra.mxu0 0.0
    %269 = vmatprep.subr.mxu0 0.0
    %270 = vmatpush2.msra.mxu0 0.0
    %271 = vmatprep.subr.mxu0 0.0
    %272 = vmatpush2.msra.mxu0 0.0
    %273 = vmatprep.subr.mxu0 0.0
    %274 = vmatpush2.msra.mxu0 0.0
    %275 = vmatprep.subr.mxu0 0.0
    %276 = vmatpush2.msra.mxu0 0.0
    %277 = vmatprep.subr.mxu0 0.0
    %278 = vmatpush2.msra.mxu0 0.0
    %279 = vmatprep.subr.mxu0 0.0
    %280 = vmatpush2.msra.mxu0 0.0
    %281 = vmatprep.subr.mxu0 0.0
    %282 = vmatpush2.msra.mxu0 0.0
    %283 = vmatprep.subr.mxu0 0.0
    %284 = vmatpush2.msra.mxu0 0.0
    %285 = vmatprep.subr.mxu0 0.0
    %286 = vmatpush2.msra.mxu0 0.0
    %287 = vmatprep.mubr.f32.mxu0 0.0
    %288 = vmatmul.mubr.f32.gmra.mxu0 %v200
    %v289 = vpop.f32.mrf.mxu0
    %v290 = vadd.f32 %v160, %v289
    %v291 = vpop.f32.mrf.mxu0
    %292 = vmatprep.mubr.f32.mxu0 0.0
    %293 = vmatmul.mubr.f32.gmra.mxu0 %v203
    %v294 = vpop.f32.mrf.mxu0
    %v295 = vadd.f32 %v165, %v294
    %v296 = vpop.f32.mrf.mxu0
    %297 = vmatprep.mubr.f32.mxu0 0.0
    %298 = vmatmul.mubr.f32.gmra.mxu0 %v206
    %v299 = vpop.f32.mrf.mxu0
    %v300 = vadd.f32 %v170, %v299
    %v301 = vpop.f32.mrf.mxu0
    %302 = vmatprep.mubr.f32.mxu0 0.0
    %303 = vmatmul.mubr.f32.gmra.mxu0 %v209
    %v304 = vpop.f32.mrf.mxu0
    %v305 = vadd.f32 %v175, %v304
    %v306 = vpop.f32.mrf.mxu0
    %307 = vmatprep.mubr.f32.mxu0 0.0
    %308 = vmatmul.mubr.f32.gmra.mxu0 %v212
    %v309 = vpop.f32.mrf.mxu0
    %v310 = vadd.f32 %v180, %v309
    %v311 = vpop.f32.mrf.mxu0
    %312 = vmatprep.mubr.f32.mxu0 0.0
    %313 = vmatmul.mubr.f32.gmra.mxu0 %v215
    %v314 = vpop.f32.mrf.mxu0
    %v315 = vadd.f32 %v185, %v314
    %v316 = vpop.f32.mrf.mxu0
    %317 = vmatprep.mubr.f32.mxu0 0.0
    %318 = vmatmul.mubr.f32.gmra.mxu0 %v218
    %v319 = vpop.f32.mrf.mxu0
    %v320 = vadd.f32 %v190, %v319
    %v321 = vpop.f32.mrf.mxu0
    %322 = vmatprep.mubr.f32.mxu0 0.0
    %323 = vmatmul.mubr.f32.gmra.mxu0 %v221
    %v324 = vpop.f32.mrf.mxu0
    %v325 = vadd.f32 %v195, %v324
    %v326 = vpop.f32.mrf.mxu0
    %327 = vdwg.mxu0
    %v328 = vmax.f32 %v290, 0.0
    %v329 = vmax.f32 %v295, 0.0
    %v330 = vmax.f32 %v300, 0.0
    %v331 = vmax.f32 %v305, 0.0
    %v332 = vmax.f32 %v310, 0.0
    %v333 = vmax.f32 %v315, 0.0
    %v334 = vmax.f32 %v320, 0.0
    %v335 = vmax.f32 %v325, 0.0
    %v336 = vld [vmem:[%s4] sm:$0xff]
    %v337 = vld [vmem:[%s4 + $0x8] sm:$0xff]
    %v338 = vld [vmem:[%s4 + $0x10] sm:$0xff]
    %v339 = vld [vmem:[%s4 + $0x18] sm:$0xff]
    %v340 = vld [vmem:[%s5] sm:$0xff]
    %v341 = vld [vmem:[%s5 + $0x8] sm:$0xff]
    %v342 = vld [vmem:[%s5 + $0x10] sm:$0xff]
    %v343 = vld [vmem:[%s5 + $0x18] sm:$0xff]
    %345 = vset.pattern.permute.xlu0 0
    %346 = vperm.xlu0 %345, %v340
    %v347 = vpop.permute.xlu0 %346
    %350 = vset.pattern.permute.xlu0 0
    %351 = vperm.xlu0 %350, %v341
    %v352 = vpop.permute.xlu0 %351
    %355 = vset.pattern.permute.xlu0 0
    %356 = vperm.xlu0 %355, %v342
    %v357 = vpop.permute.xlu0 %356
    %360 = vset.pattern.permute.xlu0 0
    %361 = vperm.xlu0 %360, %v343
    %v362 = vpop.permute.xlu0 %361
    %vm364 = vcmask 523264
    %v366 = vsel %vm364, %v336, 0
    %v369 = vsel %vm364, %v337, 0
    %v372 = vsel %vm364, %v338, 0
    %v375 = vsel %vm364, %v339, 0
    %377 = vmatprep.subr.mxu0 0.0
    %378 = vmatpush1.msra.mxu0 0.0
    %379 = vmatprep.subr.mxu0 0.0
    %380 = vmatpush1.msra.mxu0 0.0
    %381 = vmatprep.subr.mxu0 0.0
    %382 = vmatpush1.msra.mxu0 0.0
    %383 = vmatprep.subr.mxu0 0.0
    %384 = vmatpush1.msra.mxu0 0.0
    %385 = vmatprep.subr.mxu0 0.0
    %386 = vmatpush1.msra.mxu0 0.0
    %387 = vmatprep.subr.mxu0 0.0
    %388 = vmatpush1.msra.mxu0 0.0
    %389 = vmatprep.subr.mxu0 0.0
    %390 = vmatpush1.msra.mxu0 0.0
    %391 = vmatprep.subr.mxu0 0.0
    %392 = vmatpush1.msra.mxu0 0.0
    %393 = vmatprep.subr.mxu0 0.0
    %394 = vmatpush1.msra.mxu0 %v335
    %395 = vmatprep.subr.mxu0 0.0
    %396 = vmatpush1.msra.mxu0 %v334
    %397 = vmatprep.subr.mxu0 0.0
    %398 = vmatpush1.msra.mxu0 %v333
    %399 = vmatprep.subr.mxu0 0.0
    %400 = vmatpush1.msra.mxu0 %v332
    %401 = vmatprep.subr.mxu0 0.0
    %402 = vmatpush1.msra.mxu0 %v331
    %403 = vmatprep.subr.mxu0 0.0
    %404 = vmatpush1.msra.mxu0 %v330
    %405 = vmatprep.subr.mxu0 0.0
    %406 = vmatpush1.msra.mxu0 %v329
    %407 = vmatprep.subr.mxu0 0.0
    %408 = vmatpush1.msra.mxu0 %v328
    %409 = vmatprep.subr.mxu0 0.0
    %410 = vmatpush2.msra.mxu0 0.0
    %411 = vmatprep.subr.mxu0 0.0
    %412 = vmatpush2.msra.mxu0 0.0
    %413 = vmatprep.subr.mxu0 0.0
    %414 = vmatpush2.msra.mxu0 0.0
    %415 = vmatprep.subr.mxu0 0.0
    %416 = vmatpush2.msra.mxu0 0.0
    %417 = vmatprep.subr.mxu0 0.0
    %418 = vmatpush2.msra.mxu0 0.0
    %419 = vmatprep.subr.mxu0 0.0
    %420 = vmatpush2.msra.mxu0 0.0
    %421 = vmatprep.subr.mxu0 0.0
    %422 = vmatpush2.msra.mxu0 0.0
    %423 = vmatprep.subr.mxu0 0.0
    %424 = vmatpush2.msra.mxu0 0.0
    %425 = vmatprep.subr.mxu0 0.0
    %426 = vmatpush2.msra.mxu0 0.0
    %427 = vmatprep.subr.mxu0 0.0
    %428 = vmatpush2.msra.mxu0 0.0
    %429 = vmatprep.subr.mxu0 0.0
    %430 = vmatpush2.msra.mxu0 0.0
    %431 = vmatprep.subr.mxu0 0.0
    %432 = vmatpush2.msra.mxu0 0.0
    %433 = vmatprep.subr.mxu0 0.0
    %434 = vmatpush2.msra.mxu0 0.0
    %435 = vmatprep.subr.mxu0 0.0
    %436 = vmatpush2.msra.mxu0 0.0
    %437 = vmatprep.subr.mxu0 0.0
    %438 = vmatpush2.msra.mxu0 0.0
    %439 = vmatprep.subr.mxu0 0.0
    %440 = vmatpush2.msra.mxu0 0.0
    %441 = vmatprep.mubr.f32.mxu0 0.0
    %442 = vmatmul.mubr.f32.gmra.mxu0 %v366
    %v443 = vpop.f32.mrf.mxu0
    %v444 = vadd.f32 %v347, %v443
    %v445 = vpop.f32.mrf.mxu0
    %446 = vmatprep.mubr.f32.mxu0 0.0
    %447 = vmatmul.mubr.f32.gmra.mxu0 %v369
    %v448 = vpop.f32.mrf.mxu0
    %v449 = vadd.f32 %v352, %v448
    %v450 = vpop.f32.mrf.mxu0
    %451 = vmatprep.mubr.f32.mxu0 0.0
    %452 = vmatmul.mubr.f32.gmra.mxu0 %v372
    %v453 = vpop.f32.mrf.mxu0
    %v454 = vadd.f32 %v357, %v453
    %v455 = vpop.f32.mrf.mxu0
    %456 = vmatprep.mubr.f32.mxu0 0.0
    %457 = vmatmul.mubr.f32.gmra.mxu0 %v375
    %v458 = vpop.f32.mrf.mxu0
    %v459 = vadd.f32 %v362, %v458
    %v460 = vpop.f32.mrf.mxu0
    %461 = vdwg.mxu0
    %v462 = vmax.f32 %v444, 0.0
    %v463 = vmax.f32 %v449, 0.0
    %v464 = vmax.f32 %v454, 0.0
    %v465 = vmax.f32 %v459, 0.0
    %v466 = vld [vmem:[%s6] sm:$0x1]
    %v467 = vld [vmem:[#allocation2] sm:$0x1]
    %469 = vset.pattern.permute.xlu0 0
    %470 = vperm.xlu0 %469, %v467
    %v471 = vpop.permute.xlu0 %470
    %v473 = vlaneseq
    %v474 = vshrl.u32 %v473, 7
    %v475 = vsub.s32 0, %v474
    %v476 = vrot.slane %v471, %v475
    %vm477 = vcmask 261120
    %v479 = vsel %vm477, %v466, 0
    %481 = vmatprep.subr.mxu0 0.0
    %482 = vmatpush1.msra.mxu0 0.0
    %483 = vmatprep.subr.mxu0 0.0
    %484 = vmatpush1.msra.mxu0 0.0
    %485 = vmatprep.subr.mxu0 0.0
    %486 = vmatpush1.msra.mxu0 0.0
    %487 = vmatprep.subr.mxu0 0.0
    %488 = vmatpush1.msra.mxu0 0.0
    %489 = vmatprep.subr.mxu0 0.0
    %490 = vmatpush1.msra.mxu0 0.0
    %491 = vmatprep.subr.mxu0 0.0
    %492 = vmatpush1.msra.mxu0 0.0
    %493 = vmatprep.subr.mxu0 0.0
    %494 = vmatpush1.msra.mxu0 0.0
    %495 = vmatprep.subr.mxu0 0.0
    %496 = vmatpush1.msra.mxu0 0.0
    %497 = vmatprep.subr.mxu0 0.0
    %498 = vmatpush1.msra.mxu0 0.0
    %499 = vmatprep.subr.mxu0 0.0
    %500 = vmatpush1.msra.mxu0 0.0
    %501 = vmatprep.subr.mxu0 0.0
    %502 = vmatpush1.msra.mxu0 0.0
    %503 = vmatprep.subr.mxu0 0.0
    %504 = vmatpush1.msra.mxu0 0.0
    %505 = vmatprep.subr.mxu0 0.0
    %506 = vmatpush1.msra.mxu0 %v465
    %507 = vmatprep.subr.mxu0 0.0
    %508 = vmatpush1.msra.mxu0 %v464
    %509 = vmatprep.subr.mxu0 0.0
    %510 = vmatpush1.msra.mxu0 %v463
    %511 = vmatprep.subr.mxu0 0.0
    %512 = vmatpush1.msra.mxu0 %v462
    %513 = vmatprep.subr.mxu0 0.0
    %514 = vmatpush2.msra.mxu0 0.0
    %515 = vmatprep.subr.mxu0 0.0
    %516 = vmatpush2.msra.mxu0 0.0
    %517 = vmatprep.subr.mxu0 0.0
    %518 = vmatpush2.msra.mxu0 0.0
    %519 = vmatprep.subr.mxu0 0.0
    %520 = vmatpush2.msra.mxu0 0.0
    %521 = vmatprep.subr.mxu0 0.0
    %522 = vmatpush2.msra.mxu0 0.0
    %523 = vmatprep.subr.mxu0 0.0
    %524 = vmatpush2.msra.mxu0 0.0
    %525 = vmatprep.subr.mxu0 0.0
    %526 = vmatpush2.msra.mxu0 0.0
    %527 = vmatprep.subr.mxu0 0.0
    %528 = vmatpush2.msra.mxu0 0.0
    %529 = vmatprep.subr.mxu0 0.0
    %530 = vmatpush2.msra.mxu0 0.0
    %531 = vmatprep.subr.mxu0 0.0
    %532 = vmatpush2.msra.mxu0 0.0
    %533 = vmatprep.subr.mxu0 0.0
    %534 = vmatpush2.msra.mxu0 0.0
    %535 = vmatprep.subr.mxu0 0.0
    %536 = vmatpush2.msra.mxu0 0.0
    %537 = vmatprep.subr.mxu0 0.0
    %538 = vmatpush2.msra.mxu0 0.0
    %539 = vmatprep.subr.mxu0 0.0
    %540 = vmatpush2.msra.mxu0 0.0
    %541 = vmatprep.subr.mxu0 0.0
    %542 = vmatpush2.msra.mxu0 0.0
    %543 = vmatprep.subr.mxu0 0.0
    %544 = vmatpush2.msra.mxu0 0.0
    %545 = vmatprep.mubr.f32.mxu0 0.0
    %546 = vmatmul.mubr.f32.gmra.mxu0 %v479
    %v547 = vpop.f32.mrf.mxu0
    %v548 = vadd.f32 %v476, %v547
    %v549 = vpop.f32.mrf.mxu0
    %550 = vdwg.mxu0
    %vm551 = vcmask 122880
    %552 = vst.msk [vmem:[#allocation3] sm:$0x1] %vm551, %v548
    // Predicated region
    $region34: #{election_model_forward.1} parent=1 // pred_check
      _
    $region35: #{election_model_forward.1} parent=1 // pred_check_branch
      %554 = sbr.rel (0) target = $region37
    $region36: #{election_model_forward.1} parent=1 // pred_region
      %s556 = ssub.s32 16, 16
      %557 = vsyncadd [#allocation4], %s556
      %s559 = sshll.u32 [#allocation3], 4
      %s560 = int_to_ptr.vmem [resolvable:$true] %s559
      %562 = dma.vmem_to_hbm [thread:$0]  %s560, 16, %s8, [#allocation4]
    $region37: #{election_model_forward.1} parent=1 // pred_fallthru
      _
    // Predicated region
    $region38: #{election_model_forward.1} parent=1 // pred_check
      _
    $region39: #{election_model_forward.1} parent=1 // pred_check_branch
      %564 = sbr.rel (0) target = $region41
    $region40: #{election_model_forward.1} parent=1 // pred_region
      %565 = dma.done [#allocation4], 16
    $region41: #{election_model_forward.1} parent=1 // pred_fallthru
      _
    %566 = vsyncpa [#allocation4], 1

</llo_original>
